<compile_context>
chip_gen: v7x
topology: tpu7x:2x2x1
jax: 0.10.0
libtpu: 0.0.40
codegen_flags: <defaults>
</compile_context>

<pallas_src>
import functools

import jax
import jax.numpy as jnp
from jax.experimental import pallas as pl
from jax.experimental.pallas import tpu as pltpu

_LANE = 128


def _round_up(n: int, m: int) -> int:
    return ((n + m - 1) // m) * m


def _actor_kernel(stats_ref, x_ref, w1_ref, b1_ref, w2_ref, b2_ref, w3_ref,
                  b3_ref, o_ref, *, max_action: float, use_z_score: bool):
    x = x_ref[...].astype(jnp.float32)

    if use_z_score:
        # Global (whole input tensor) stats precomputed in the wrapper:
        # stats = [mean, 1/(std_ddof1 + 1e-8)]  -> matches torch z_score_normalize.
        mean = stats_ref[0]
        inv = stats_ref[1]
        x = (x - mean) * inv

    # MXU matmuls: bf16 x bf16 inputs, f32 accumulation. Bias add / ReLU on VPU in f32.
    h1 = jnp.dot(x.astype(jnp.bfloat16), w1_ref[...],
                 preferred_element_type=jnp.float32) + b1_ref[...]
    h1 = jnp.maximum(h1, 0.0)

    h2 = jnp.dot(h1.astype(jnp.bfloat16), w2_ref[...],
                 preferred_element_type=jnp.float32) + b2_ref[...]
    h2 = jnp.maximum(h2, 0.0)

    a = jnp.dot(h2.astype(jnp.bfloat16), w3_ref[...],
                preferred_element_type=jnp.float32) + b3_ref[...]
    o_ref[...] = (max_action * jnp.tanh(a)).astype(o_ref.dtype)


def actor_forward(x, params, *, max_action: float, use_z_score: bool = True):
    """Pallas-backed Actor.forward.

    x: (B, obs_dim) float32
    params: dict with w1 (obs,256) bf16, b1 (1,256) f32, w2 (256,256) bf16,
            b2 (1,256) f32, w3 (256,act) bf16, b3 (1,act) f32
            (weights stored (in, out) so the kernel computes x @ W + b).
    returns: (B, act) float32
    """
    B, obs_dim = x.shape
    hidden = params["w1"].shape[1]
    act_dim = params["w3"].shape[1]

    # --- global z-score stats, computed once over the WHOLE (B, obs) tensor ---
    if use_z_score:
        mean = jnp.mean(x)
        std = jnp.std(x, ddof=1)            # torch .std() is unbiased (ddof=1)
        inv = 1.0 / (std + 1e-8)
        stats = jnp.stack([mean, inv]).astype(jnp.float32)
    else:
        stats = jnp.zeros((2,), jnp.float32)

    # --- batch tiling: TM rows per grid step, weights resident across steps ---
    TM = 128 if B >= 128 else _round_up(B, 8)
    B_pad = _round_up(B, TM)
    if B_pad != B:
        x = jnp.pad(x, ((0, B_pad - B), (0, 0)))

    # --- lane-dense output: pad act_dim up to a multiple of 128 lanes ---
    out_pad = _round_up(act_dim, _LANE)
    w3, b3 = params["w3"], params["b3"]
    if out_pad != act_dim:
        w3 = jnp.pad(w3, ((0, 0), (0, out_pad - act_dim)))
        b3 = jnp.pad(b3, ((0, 0), (0, out_pad - act_dim)))

    grid = (B_pad // TM,)

    kernel = functools.partial(
        _actor_kernel, max_action=float(max_action), use_z_score=bool(use_z_score)
    )

    flops = 2 * B_pad * (obs_dim * hidden + hidden * hidden + hidden * out_pad)
    bytes_accessed = int(
        B_pad * obs_dim * 4                     # x (f32)
        + obs_dim * hidden * 2                  # w1 (bf16)
        + hidden * hidden * 2                   # w2 (bf16)
        + hidden * out_pad * 2                  # w3 (bf16, padded)
        + (hidden + hidden + out_pad) * 4       # biases (f32)
        + B_pad * out_pad * 4                   # output (f32)
    )
    cost = pl.CostEstimate(
        flops=flops, transcendentals=B_pad * out_pad, bytes_accessed=bytes_accessed
    )

    grid_spec = pltpu.PrefetchScalarGridSpec(
        num_scalar_prefetch=1,                  # stats -> SMEM scalars
        grid=grid,
        in_specs=[
            pl.BlockSpec((TM, obs_dim), lambda i, s: (i, 0)),      # x batch tile
            pl.BlockSpec((obs_dim, hidden), lambda i, s: (0, 0)),  # w1 (resident)
            pl.BlockSpec((1, hidden), lambda i, s: (0, 0)),        # b1 (resident)
            pl.BlockSpec((hidden, hidden), lambda i, s: (0, 0)),   # w2 (resident)
            pl.BlockSpec((1, hidden), lambda i, s: (0, 0)),        # b2 (resident)
            pl.BlockSpec((hidden, out_pad), lambda i, s: (0, 0)),  # w3 (resident)
            pl.BlockSpec((1, out_pad), lambda i, s: (0, 0)),       # b3 (resident)
        ],
        out_specs=pl.BlockSpec((TM, out_pad), lambda i, s: (i, 0)),
    )

    out = pl.pallas_call(
        kernel,
        out_shape=jax.ShapeDtypeStruct((B_pad, out_pad), jnp.float32),
        grid_spec=grid_spec,
        compiler_params=pltpu.CompilerParams(
            # batch axis is independent -> megacore split on v7x, no-op on v5e/v6e
            dimension_semantics=("parallel",),
        ),
        cost_estimate=cost,
    )(stats, x, params["w1"], params["b1"], params["w2"], params["b2"], w3, b3)

    return out[:B, :act_dim]


def init_actor_params(key, obs_dim: int, action_dim: int, hidden: int = 256):
    """Orthogonal weight init (gain=1), zero biases — mirrors orthogonal_init().

    Weights are stored (in, out) and in bf16 (MXU-native, half the DMA bytes);
    biases stay f32 as (1, out) rows for TPU-friendly broadcasting.
    """
    k1, k2, k3 = jax.random.split(key, 3)
    ortho = jax.nn.initializers.orthogonal(scale=1.0)
    return {
        "w1": ortho(k1, (obs_dim, hidden), jnp.float32).astype(jnp.bfloat16),
        "b1": jnp.zeros((1, hidden), jnp.float32),
        "w2": ortho(k2, (hidden, hidden), jnp.float32).astype(jnp.bfloat16),
        "b2": jnp.zeros((1, hidden), jnp.float32),
        "w3": ortho(k3, (hidden, action_dim), jnp.float32).astype(jnp.bfloat16),
        "b3": jnp.zeros((1, action_dim), jnp.float32),
    }


def _reference_forward(x, params, *, max_action, use_z_score):
    """Pure-JAX reference with the same dtypes as the kernel (sanity check)."""
    if use_z_score:
        mean = jnp.mean(x)
        std = jnp.std(x, ddof=1)
        x = (x - mean) * (1.0 / (std + 1e-8))
    h1 = jax.nn.relu(jnp.dot(x.astype(jnp.bfloat16), params["w1"],
                             preferred_element_type=jnp.float32) + params["b1"])
    h2 = jax.nn.relu(jnp.dot(h1.astype(jnp.bfloat16), params["w2"],
                             preferred_element_type=jnp.float32) + params["b2"])
    a = jnp.dot(h2.astype(jnp.bfloat16), params["w3"],
                preferred_element_type=jnp.float32) + params["b3"]
    return max_action * jnp.tanh(a)


if __name__ == "__main__":
    key = jax.random.PRNGKey(0)
    k_params, k_x1, k_x2 = jax.random.split(key, 3)

    obs_dim = 32
    action_dim = 4
    max_action = 1.0
    params = init_actor_params(k_params, obs_dim, action_dim)

    # Small batch: single grid step (TM = 8).
    x_small = jax.random.normal(k_x1, (8, obs_dim), dtype=jnp.float32)
    out_small = jax.block_until_ready(
        actor_forward(x_small, params, max_action=max_action, use_z_score=True))
    ref_small = _reference_forward(x_small, params, max_action=max_action,
                                   use_z_score=True)
    assert out_small.shape == (8, action_dim)
    assert jnp.allclose(out_small, ref_small, atol=1e-3, rtol=1e-3)

    # Larger batch: exercises TM=128 tiling, batch padding and output slicing.
    x_big = jax.random.normal(k_x2, (200, obs_dim), dtype=jnp.float32)
    out_big = jax.block_until_ready(
        actor_forward(x_big, params, max_action=max_action, use_z_score=True))
    ref_big = _reference_forward(x_big, params, max_action=max_action,
                                 use_z_score=True)
    assert out_big.shape == (200, action_dim)
    assert jnp.allclose(out_big, ref_big, atol=1e-3, rtol=1e-3)

    print("KERNEL_OK")
</pallas_src>

<mosaic_0001>
module attributes {stable_mosaic.version = 11 : i64} {
  func.func @_actor_kernel(%arg0: i32, %arg1: memref<2xf32, #tpu.memory_space<smem>>, %arg2: memref<8x32xf32, #tpu.memory_space<vmem>>, %arg3: memref<32x256xbf16, #tpu.memory_space<vmem>>, %arg4: memref<1x256xf32, #tpu.memory_space<vmem>>, %arg5: memref<256x256xbf16, #tpu.memory_space<vmem>>, %arg6: memref<1x256xf32, #tpu.memory_space<vmem>>, %arg7: memref<256x128xbf16, #tpu.memory_space<vmem>>, %arg8: memref<1x128xf32, #tpu.memory_space<vmem>>, %arg9: memref<8x128xf32, #tpu.memory_space<vmem>>) attributes {dimension_semantics = [#tpu.dimension_semantics<parallel>], iteration_bounds = array<i64: 1>, scalar_prefetch = 1 : i64, scratch_operands = 0 : i64, tpu.core_type = #tpu.core_type<tc>, window_params = [{transform_indices = @transform_0, window_bounds = array<i64: 8, 32>}, {pipeline_mode = #tpu.pipeline_mode<synchronous>, transform_indices = @transform_1, window_bounds = array<i64: 32, 256>}, {pipeline_mode = #tpu.pipeline_mode<synchronous>, transform_indices = @transform_2, window_bounds = array<i64: 1, 256>}, {pipeline_mode = #tpu.pipeline_mode<synchronous>, transform_indices = @transform_3, window_bounds = array<i64: 256, 256>}, {pipeline_mode = #tpu.pipeline_mode<synchronous>, transform_indices = @transform_4, window_bounds = array<i64: 1, 256>}, {pipeline_mode = #tpu.pipeline_mode<synchronous>, transform_indices = @transform_5, window_bounds = array<i64: 256, 128>}, {pipeline_mode = #tpu.pipeline_mode<synchronous>, transform_indices = @transform_6, window_bounds = array<i64: 1, 128>}, {transform_indices = @transform_7, window_bounds = array<i64: 8, 128>}]} {
    %c0 = arith.constant 0 : index
    %c0_0 = arith.constant 0 : index
    %0 = vector.load %arg2[%c0, %c0_0] : memref<8x32xf32, #tpu.memory_space<vmem>>, vector<8x32xf32>
    %c0_1 = arith.constant 0 : index
    %1 = memref.load %arg1[%c0_1] : memref<2xf32, #tpu.memory_space<smem>>
    %c1 = arith.constant 1 : index
    %2 = memref.load %arg1[%c1] : memref<2xf32, #tpu.memory_space<smem>>
    %3 = vector.broadcast %1 : f32 to vector<8x32xf32>
    %4 = arith.subf %0, %3 : vector<8x32xf32>
    %5 = vector.broadcast %2 : f32 to vector<8x32xf32>
    %6 = arith.mulf %4, %5 : vector<8x32xf32>
    %7 = arith.truncf %6 : vector<8x32xf32> to vector<8x32xbf16>
    %c0_2 = arith.constant 0 : index
    %c0_3 = arith.constant 0 : index
    %8 = vector.load %arg3[%c0_2, %c0_3] : memref<32x256xbf16, #tpu.memory_space<vmem>>, vector<32x256xbf16>
    %cst = arith.constant dense<0.000000e+00> : vector<8x256xf32>
    %9 = tpu.matmul %7, %8, %cst {dimension_numbers = #tpu.dot_dimension_numbers<[1], [0], [0], [1], [0, 0, 1, 1], [], []>} : vector<8x32xbf16>, vector<32x256xbf16>, vector<8x256xf32> -> vector<8x256xf32>
    %c0_4 = arith.constant 0 : index
    %c0_5 = arith.constant 0 : index
    %10 = vector.load %arg4[%c0_4, %c0_5] : memref<1x256xf32, #tpu.memory_space<vmem>>, vector<1x256xf32>
    %11 = vector.broadcast %10 : vector<1x256xf32> to vector<8x256xf32>
    %12 = arith.addf %9, %11 : vector<8x256xf32>
    %cst_6 = arith.constant 0.000000e+00 : f32
    %13 = vector.broadcast %cst_6 : f32 to vector<8x256xf32>
    %14 = arith.maximumf %12, %13 : vector<8x256xf32>
    %15 = arith.truncf %14 : vector<8x256xf32> to vector<8x256xbf16>
    %c0_7 = arith.constant 0 : index
    %c0_8 = arith.constant 0 : index
    %16 = vector.load %arg5[%c0_7, %c0_8] : memref<256x256xbf16, #tpu.memory_space<vmem>>, vector<256x256xbf16>
    %cst_9 = arith.constant dense<0.000000e+00> : vector<8x256xf32>
    %17 = tpu.matmul %15, %16, %cst_9 {dimension_numbers = #tpu.dot_dimension_numbers<[1], [0], [0], [1], [0, 0, 1, 1], [], []>} : vector<8x256xbf16>, vector<256x256xbf16>, vector<8x256xf32> -> vector<8x256xf32>
    %c0_10 = arith.constant 0 : index
    %c0_11 = arith.constant 0 : index
    %18 = vector.load %arg6[%c0_10, %c0_11] : memref<1x256xf32, #tpu.memory_space<vmem>>, vector<1x256xf32>
    %19 = vector.broadcast %18 : vector<1x256xf32> to vector<8x256xf32>
    %20 = arith.addf %17, %19 : vector<8x256xf32>
    %cst_12 = arith.constant 0.000000e+00 : f32
    %21 = vector.broadcast %cst_12 : f32 to vector<8x256xf32>
    %22 = arith.maximumf %20, %21 : vector<8x256xf32>
    %23 = arith.truncf %22 : vector<8x256xf32> to vector<8x256xbf16>
    %c0_13 = arith.constant 0 : index
    %c0_14 = arith.constant 0 : index
    %24 = vector.load %arg7[%c0_13, %c0_14] : memref<256x128xbf16, #tpu.memory_space<vmem>>, vector<256x128xbf16>
    %cst_15 = arith.constant dense<0.000000e+00> : vector<8x128xf32>
    %25 = tpu.matmul %23, %24, %cst_15 {dimension_numbers = #tpu.dot_dimension_numbers<[1], [0], [0], [1], [0, 0, 1, 1], [], []>} : vector<8x256xbf16>, vector<256x128xbf16>, vector<8x128xf32> -> vector<8x128xf32>
    %c0_16 = arith.constant 0 : index
    %c0_17 = arith.constant 0 : index
    %26 = vector.load %arg8[%c0_16, %c0_17] : memref<1x128xf32, #tpu.memory_space<vmem>>, vector<1x128xf32>
    %27 = vector.broadcast %26 : vector<1x128xf32> to vector<8x128xf32>
    %28 = arith.addf %25, %27 : vector<8x128xf32>
    %29 = math.tanh %28 : vector<8x128xf32>
    %cst_18 = arith.constant 1.000000e+00 : f32
    %30 = vector.broadcast %cst_18 : f32 to vector<8x128xf32>
    %31 = arith.mulf %30, %29 : vector<8x128xf32>
    %c0_19 = arith.constant 0 : index
    %c0_20 = arith.constant 0 : index
    %32 = vector.load %arg9[%c0_19, %c0_20] : memref<8x128xf32, #tpu.memory_space<vmem>>, vector<8x128xf32>
    tpu.vector_store %arg9[%c0_19, %c0_20], %31 {strides = array<i32>} : memref<8x128xf32, #tpu.memory_space<vmem>>, vector<8x128xf32>,
    return
  }
  func.func @transform_0(%arg0: i32, %arg1: memref<2xf32, #tpu.memory_space<smem>>) -> (i32, i32) {
    %c0_i32 = arith.constant 0 : i32
    %c0_i32_0 = arith.constant 0 : i32
    return %arg0, %c0_i32 : i32, i32
  }
  func.func @transform_1(%arg0: i32, %arg1: memref<2xf32, #tpu.memory_space<smem>>) -> (i32, i32) {
    %c0_i32 = arith.constant 0 : i32
    %c0_i32_0 = arith.constant 0 : i32
    %c0_i32_1 = arith.constant 0 : i32
    return %c0_i32, %c0_i32_0 : i32, i32
  }
  func.func @transform_2(%arg0: i32, %arg1: memref<2xf32, #tpu.memory_space<smem>>) -> (i32, i32) {
    %c0_i32 = arith.constant 0 : i32
    %c0_i32_0 = arith.constant 0 : i32
    %c0_i32_1 = arith.constant 0 : i32
    return %c0_i32, %c0_i32_0 : i32, i32
  }
  func.func @transform_3(%arg0: i32, %arg1: memref<2xf32, #tpu.memory_space<smem>>) -> (i32, i32) {
    %c0_i32 = arith.constant 0 : i32
    %c0_i32_0 = arith.constant 0 : i32
    %c0_i32_1 = arith.constant 0 : i32
    return %c0_i32, %c0_i32_0 : i32, i32
  }
  func.func @transform_4(%arg0: i32, %arg1: memref<2xf32, #tpu.memory_space<smem>>) -> (i32, i32) {
    %c0_i32 = arith.constant 0 : i32
    %c0_i32_0 = arith.constant 0 : i32
    %c0_i32_1 = arith.constant 0 : i32
    return %c0_i32, %c0_i32_0 : i32, i32
  }
  func.func @transform_5(%arg0: i32, %arg1: memref<2xf32, #tpu.memory_space<smem>>) -> (i32, i32) {
    %c0_i32 = arith.constant 0 : i32
    %c0_i32_0 = arith.constant 0 : i32
    %c0_i32_1 = arith.constant 0 : i32
    return %c0_i32, %c0_i32_0 : i32, i32
  }
  func.func @transform_6(%arg0: i32, %arg1: memref<2xf32, #tpu.memory_space<smem>>) -> (i32, i32) {
    %c0_i32 = arith.constant 0 : i32
    %c0_i32_0 = arith.constant 0 : i32
    %c0_i32_1 = arith.constant 0 : i32
    return %c0_i32, %c0_i32_0 : i32, i32
  }
  func.func @transform_7(%arg0: i32, %arg1: memref<2xf32, #tpu.memory_space<smem>>) -> (i32, i32) {
    %c0_i32 = arith.constant 0 : i32
    %c0_i32_0 = arith.constant 0 : i32
    return %arg0, %c0_i32 : i32, i32
  }
}

</mosaic_0001>

<llo_original>
// kernel: tpu_custom_call.1
$region0: #{tpu_custom_call.1}
  #allocation0 [shape = 'u32[]', space=smem, size = 0x4, offset = 0x4, fixed_abs, tag = 'smem constant byte address 0x4 - core index']
  #allocation1 [shape = 'u32[144,128]{1,0:T(1,128)}', space=vmem, size = 0x12000, scoped, tag = 'internal scratch']
  #allocation2 [shape = 's32[1]{0}', space=sflag, size = 0x4, scoped, tag = 'scoped memory for tpu_custom_call.1']
  #allocation3 [shape = 'u8[512]{0}', space=smem, size = 0x200, scoped, tag = 'prefetched SMEM operand 0']
  %s0 = inlined_call_operand.hbm [shape: f32[2], index: 0, kind: input, shape index: {}]
  %s1 = inlined_call_operand.hbm [shape: f32[8,32], index: 1, kind: input, shape index: {}]
  %s2 = inlined_call_operand.hbm [shape: bf16[32,256], index: 2, kind: input, shape index: {}]
  %s3 = inlined_call_operand.vmem [shape: f32[1,256], index: 3, kind: input, shape index: {}]
  %s4 = inlined_call_operand.hbm [shape: bf16[256,256], index: 4, kind: input, shape index: {}]
  %s5 = inlined_call_operand.vmem [shape: f32[1,256], index: 5, kind: input, shape index: {}]
  %s6 = inlined_call_operand.hbm [shape: bf16[256,128], index: 6, kind: input, shape index: {}]
  %s7 = inlined_call_operand.vmem [shape: f32[1,128], index: 7, kind: input, shape index: {}]
  %s8 = inlined_call_operand.hbm [shape: f32[8,128], index: 8, kind: output, shape index: {}]
  %s9 = sld [smem:[#allocation0]]
  $region54: #{tpu_custom_call.1} parent=0
    _
  %s11 = ssub.s32 1, %s9
  %s12 = scalar_select 0, %s11, %s9
  %14 = dma.hbm_to_smem %s0, 16, [#allocation3], [#allocation2]
  %15 = dma.done [#allocation2], 16
  %16 = sfence
  $region1: #{tpu_custom_call.1} parent=0
    #allocation4 [shape = 'u8[4096]{0}', space=vmem, size = 0x1000, scoped, tag = 'input window, operand 1, single buffered']
    #allocation5 [shape = 's32[1]{0}', space=sflag, size = 0x4, scoped, tag = 'scoped memory for tpu_custom_call.1']
    #allocation6 [shape = 's32[1]{0}', space=sflag, size = 0x4, scoped, tag = 'scoped memory for tpu_custom_call.1']
    #allocation7 [shape = 'u8[16384]{0}', space=vmem, size = 0x4000, scoped, tag = 'input window, operand 2, single buffered']
    #allocation8 [shape = 's32[1]{0}', space=sflag, size = 0x4, scoped, tag = 'scoped memory for tpu_custom_call.1']
    #allocation9 [shape = 'u8[131072]{0}', space=vmem, size = 0x20000, scoped, tag = 'input window, operand 4, single buffered']
    #allocation10 [shape = 'u8[65536]{0}', space=vmem, size = 0x10000, scoped, tag = 'input window, operand 6, single buffered']
    #allocation11 [shape = 's32[1]{0}', space=sflag, size = 0x4, scoped, tag = 'scoped memory for tpu_custom_call.1']
    #allocation12 [shape = 'u8[4096]{0}', space=vmem, size = 0x1000, scoped, tag = 'output window, operand 0, single buffered']
    %17 = vsyncpa [#allocation5], 0
    %18 = vsyncpa [#allocation8], 0
    %19 = vsyncpa [#allocation11], 0
    %20 = vsyncpa [#allocation6], 0
    // Predicated region
    $region2: #{tpu_custom_call.1} parent=1 // pred_check
      _
    $region3: #{tpu_custom_call.1} parent=1 // pred_check_branch
      %22 = sbr.rel (0) target = $region5
    $region4: #{tpu_custom_call.1} parent=1 // pred_region
      %s24 = ssub.s32 128, 128
      %25 = vsyncadd [#allocation5], %s24
      %s27 = sshll.u32 [#allocation4], 4
      %s28 = int_to_ptr.vmem [resolvable:$true] %s27
      %30 = dma.hbm_to_vmem [thread:$0]  %s1, 128, %s28, [#allocation5]
    $region5: #{tpu_custom_call.1} parent=1 // pred_fallthru
      _
    // Predicated region
    $region6: #{tpu_custom_call.1} parent=1 // pred_check
      _
    $region7: #{tpu_custom_call.1} parent=1 // pred_check_branch
      %32 = sbr.rel (0) target = $region9
    $region8: #{tpu_custom_call.1} parent=1 // pred_region
      %s34 = ssub.s32 512, 512
      %35 = vsyncadd [#allocation8], %s34
      %s36 = sshll.u32 [#allocation7], 4
      %s37 = int_to_ptr.vmem [resolvable:$true] %s36
      %42 = dma.hbm_to_vmem [thread:$0]  %s2, 512, %s37, [#allocation8], 128, 128, 8
    $region9: #{tpu_custom_call.1} parent=1 // pred_fallthru
      _
    // Predicated region
    $region10: #{tpu_custom_call.1} parent=1 // pred_check
      _
    $region11: #{tpu_custom_call.1} parent=1 // pred_check_branch
      %44 = sbr.rel (0) target = $region13
    $region12: #{tpu_custom_call.1} parent=1 // pred_region
      _
    $region13: #{tpu_custom_call.1} parent=1 // pred_fallthru
      _
    // Predicated region
    $region14: #{tpu_custom_call.1} parent=1 // pred_check
      _
    $region15: #{tpu_custom_call.1} parent=1 // pred_check_branch
      %46 = sbr.rel (0) target = $region17
    $region16: #{tpu_custom_call.1} parent=1 // pred_region
      %s48 = ssub.s32 4096, 4096
      %49 = vsyncadd [#allocation8], %s48
      %s50 = sshll.u32 [#allocation9], 4
      %s51 = int_to_ptr.vmem [resolvable:$true] %s50
      %56 = dma.hbm_to_vmem [thread:$0]  %s4, 4096, %s51, [#allocation8], 128, 128, 8
    $region17: #{tpu_custom_call.1} parent=1 // pred_fallthru
      _
    // Predicated region
    $region18: #{tpu_custom_call.1} parent=1 // pred_check
      _
    $region19: #{tpu_custom_call.1} parent=1 // pred_check_branch
      %58 = sbr.rel (0) target = $region21
    $region20: #{tpu_custom_call.1} parent=1 // pred_region
      _
    $region21: #{tpu_custom_call.1} parent=1 // pred_fallthru
      _
    // Predicated region
    $region22: #{tpu_custom_call.1} parent=1 // pred_check
      _
    $region23: #{tpu_custom_call.1} parent=1 // pred_check_branch
      %60 = sbr.rel (0) target = $region25
    $region24: #{tpu_custom_call.1} parent=1 // pred_region
      %s62 = ssub.s32 2048, 2048
      %63 = vsyncadd [#allocation11], %s62
      %s64 = sshll.u32 [#allocation10], 4
      %s65 = int_to_ptr.vmem [resolvable:$true] %s64
      %70 = dma.hbm_to_vmem [thread:$0]  %s6, 2048, %s65, [#allocation11], 64, 64, 4
    $region25: #{tpu_custom_call.1} parent=1 // pred_fallthru
      _
    // Predicated region
    $region26: #{tpu_custom_call.1} parent=1 // pred_check
      _
    $region27: #{tpu_custom_call.1} parent=1 // pred_check_branch
      %72 = sbr.rel (0) target = $region29
    $region28: #{tpu_custom_call.1} parent=1 // pred_region
      _
    $region29: #{tpu_custom_call.1} parent=1 // pred_fallthru
      _
    // Predicated region
    $region30: #{tpu_custom_call.1} parent=1 // pred_check
      _
    $region31: #{tpu_custom_call.1} parent=1 // pred_check_branch
      %74 = sbr.rel (0) target = $region33
    $region32: #{tpu_custom_call.1} parent=1 // pred_region
      %75 = dma.done [#allocation5], 128
    $region33: #{tpu_custom_call.1} parent=1 // pred_fallthru
      _
    // Predicated region
    $region34: #{tpu_custom_call.1} parent=1 // pred_check
      _
    $region35: #{tpu_custom_call.1} parent=1 // pred_check_branch
      %77 = sbr.rel (0) target = $region37
    $region36: #{tpu_custom_call.1} parent=1 // pred_region
      %78 = dma.done [#allocation8], 512
    $region37: #{tpu_custom_call.1} parent=1 // pred_fallthru
      _
    // Predicated region
    $region38: #{tpu_custom_call.1} parent=1 // pred_check
      _
    $region39: #{tpu_custom_call.1} parent=1 // pred_check_branch
      %80 = sbr.rel (0) target = $region41
    $region40: #{tpu_custom_call.1} parent=1 // pred_region
      %81 = dma.done [#allocation8], 4096
    $region41: #{tpu_custom_call.1} parent=1 // pred_fallthru
      _
    // Predicated region
    $region42: #{tpu_custom_call.1} parent=1 // pred_check
      _
    $region43: #{tpu_custom_call.1} parent=1 // pred_check_branch
      %83 = sbr.rel (0) target = $region45
    $region44: #{tpu_custom_call.1} parent=1 // pred_region
      %84 = dma.done [#allocation11], 2048
    $region45: #{tpu_custom_call.1} parent=1 // pred_fallthru
      _
    %v86 = vld [vmem:[#allocation4] sm:$0xff]
    %s87 = sld [smem:[#allocation3]]
    %s88 = sld [smem:[#allocation3 + $0x1]]
    %v89 = vstv %s87
    %v90 = vsub.f32 %v86, %v89
    %v91 = vstv %s88
    %v92 = vmul.f32 %v90, %v91
    %v93 = vpack.c.bf16 %v92, %v92
    %v94 = vld [vmem:[#allocation7] sm:$0xff]
    %v95 = vld [vmem:[#allocation7 + $0x8] sm:$0xff]
    %v96 = vld [vmem:[#allocation7 + $0x10] sm:$0xff]
    %v97 = vld [vmem:[#allocation7 + $0x18] sm:$0xff]
    %v98 = vld [vmem:[%s3] sm:$0x3]
    %v100 = vlaneseq
    %v101 = vshrl.u32 %v100, 7
    %v102 = vsub.s32 0, %v101
    %v103 = vrot.slane %v98, %v102
    %v104 = vlaneseq
    %v105 = vshrl.u32 %v104, 7
    %v106 = vsub.s32 1, %v105
    %v107 = vrot.slane %v98, %v106
    %v114 = vunpack.c.l.b16 %v94
    %v115 = vunpack.c.h.b16 %v94
    %v116 = vunpack.c.l.b16 %v95
    %v117 = vunpack.c.h.b16 %v95
    %v118 = vunpack.c.l.b16 %v96
    %v119 = vunpack.c.h.b16 %v96
    %v120 = vunpack.c.l.b16 %v97
    %v121 = vunpack.c.h.b16 %v97
    %v122 = vpack.c.b16 %v116, %v114
    %v123 = vpack.c.b16 %v117, %v115
    %v124 = vpack.c.b16 %v120, %v118
    %v125 = vpack.c.b16 %v121, %v119
    %vm130 = vcmask 261120
    %v132 = vsel %vm130, %v93, 0
    %134 = vmatprep.subr.bf16.mxu0 %v123
    %135 = vmatpush1.bf16.msra.mxu0 %v122
    %136 = vmatprep.subr.bf16.mxu0 %v125
    %137 = vmatpush1.bf16.msra.mxu0 %v124
    %138 = vmatprep.subr.bf16.mxu0 0
    %139 = vmatpush1.bf16.msra.mxu0 0
    %140 = vmatprep.subr.bf16.mxu0 0
    %141 = vmatpush1.bf16.msra.mxu0 0
    %142 = vmatprep.subr.bf16.mxu0 0
    %143 = vmatpush1.bf16.msra.mxu0 0
    %144 = vmatprep.subr.bf16.mxu0 0
    %145 = vmatpush1.bf16.msra.mxu0 0
    %146 = vmatprep.subr.bf16.mxu0 0
    %147 = vmatpush1.bf16.msra.mxu0 0
    %148 = vmatprep.subr.bf16.mxu0 0
    %149 = vmatpush1.bf16.msra.mxu0 0
    %150 = vmatprep.subr.bf16.mxu0 0
    %151 = vmatpush1.bf16.msra.mxu0 0
    %152 = vmatprep.subr.bf16.mxu0 0
    %153 = vmatpush1.bf16.msra.mxu0 0
    %154 = vmatprep.subr.bf16.mxu0 0
    %155 = vmatpush1.bf16.msra.mxu0 0
    %156 = vmatprep.subr.bf16.mxu0 0
    %157 = vmatpush1.bf16.msra.mxu0 0
    %158 = vmatprep.subr.bf16.mxu0 0
    %159 = vmatpush1.bf16.msra.mxu0 0
    %160 = vmatprep.subr.bf16.mxu0 0
    %161 = vmatpush1.bf16.msra.mxu0 0
    %162 = vmatprep.subr.bf16.mxu0 0
    %163 = vmatpush1.bf16.msra.mxu0 0
    %164 = vmatprep.subr.bf16.mxu0 0
    %165 = vmatpush1.bf16.msra.mxu0 0
    %166 = vmatprep.mubr.bf16.mxu0 0
    %167 = vmatmul.mubr.bf16.gmra.mrb[0].mxu0 %v132
    %v168 = vpop.f32.mrb[0].mxu0
    %v169 = vadd.f32 %v103, %v168
    %v170 = vpop.f32.mrb[0].mxu0
    %v171 = vadd.f32 %v107, %v170
    %v172 = vpop.f32.mrb[0].mxu0
    %v173 = vpop.f32.mrb[0].mxu0
    %174 = vdwg.mxu0
    %v175 = vmax.f32 %v169, 0.0
    %v176 = vmax.f32 %v171, 0.0
    %v177 = vpack.c.bf16 %v175, %v175
    %v178 = vpack.c.bf16 %v176, %v176
    %v179 = vld [vmem:[#allocation9] sm:$0xff]
    %v180 = vld [vmem:[#allocation9 + $0x8] sm:$0xff]
    %v181 = vld [vmem:[#allocation9 + $0x10] sm:$0xff]
    %v182 = vld [vmem:[#allocation9 + $0x18] sm:$0xff]
    %v183 = vld [vmem:[#allocation9 + $0x20] sm:$0xff]
    %v184 = vld [vmem:[#allocation9 + $0x28] sm:$0xff]
    %v185 = vld [vmem:[#allocation9 + $0x30] sm:$0xff]
    %v186 = vld [vmem:[#allocation9 + $0x38] sm:$0xff]
    %v187 = vld [vmem:[#allocation9 + $0x40] sm:$0xff]
    %v188 = vld [vmem:[#allocation9 + $0x48] sm:$0xff]
    %v189 = vld [vmem:[#allocation9 + $0x50] sm:$0xff]
    %v190 = vld [vmem:[#allocation9 + $0x58] sm:$0xff]
    %v191 = vld [vmem:[#allocation9 + $0x60] sm:$0xff]
    %v192 = vld [vmem:[#allocation9 + $0x68] sm:$0xff]
    %v193 = vld [vmem:[#allocation9 + $0x70] sm:$0xff]
    %v194 = vld [vmem:[#allocation9 + $0x78] sm:$0xff]
    %v195 = vld [vmem:[#allocation9 + $0x80] sm:$0xff]
    %v196 = vld [vmem:[#allocation9 + $0x88] sm:$0xff]
    %v197 = vld [vmem:[#allocation9 + $0x90] sm:$0xff]
    %v198 = vld [vmem:[#allocation9 + $0x98] sm:$0xff]
    %v199 = vld [vmem:[#allocation9 + $0xa0] sm:$0xff]
    %v200 = vld [vmem:[#allocation9 + $0xa8] sm:$0xff]
    %v201 = vld [vmem:[#allocation9 + $0xb0] sm:$0xff]
    %v202 = vld [vmem:[#allocation9 + $0xb8] sm:$0xff]
    %v203 = vld [vmem:[#allocation9 + $0xc0] sm:$0xff]
    %v204 = vld [vmem:[#allocation9 + $0xc8] sm:$0xff]
    %v205 = vld [vmem:[#allocation9 + $0xd0] sm:$0xff]
    %v206 = vld [vmem:[#allocation9 + $0xd8] sm:$0xff]
    %v207 = vld [vmem:[#allocation9 + $0xe0] sm:$0xff]
    %v208 = vld [vmem:[#allocation9 + $0xe8] sm:$0xff]
    %v209 = vld [vmem:[#allocation9 + $0xf0] sm:$0xff]
    %v210 = vld [vmem:[#allocation9 + $0xf8] sm:$0xff]
    %v211 = vld [vmem:[%s5] sm:$0x3]
    %v213 = vlaneseq
    %v214 = vshrl.u32 %v213, 7
    %v215 = vsub.s32 0, %v214
    %v216 = vrot.slane %v211, %v215
    %v217 = vlaneseq
    %v218 = vshrl.u32 %v217, 7
    %v219 = vsub.s32 1, %v218
    %v220 = vrot.slane %v211, %v219
    %v255 = vunpack.c.l.b16 %v179
    %v256 = vunpack.c.h.b16 %v179
    %v257 = vunpack.c.l.b16 %v180
    %v258 = vunpack.c.h.b16 %v180
    %v259 = vunpack.c.l.b16 %v181
    %v260 = vunpack.c.h.b16 %v181
    %v261 = vunpack.c.l.b16 %v182
    %v262 = vunpack.c.h.b16 %v182
    %v263 = vunpack.c.l.b16 %v183
    %v264 = vunpack.c.h.b16 %v183
    %v265 = vunpack.c.l.b16 %v184
    %v266 = vunpack.c.h.b16 %v184
    %v267 = vunpack.c.l.b16 %v185
    %v268 = vunpack.c.h.b16 %v185
    %v269 = vunpack.c.l.b16 %v186
    %v270 = vunpack.c.h.b16 %v186
    %v271 = vunpack.c.l.b16 %v187
    %v272 = vunpack.c.h.b16 %v187
    %v273 = vunpack.c.l.b16 %v188
    %v274 = vunpack.c.h.b16 %v188
    %v275 = vunpack.c.l.b16 %v189
    %v276 = vunpack.c.h.b16 %v189
    %v277 = vunpack.c.l.b16 %v190
    %v278 = vunpack.c.h.b16 %v190
    %v279 = vunpack.c.l.b16 %v191
    %v280 = vunpack.c.h.b16 %v191
    %v281 = vunpack.c.l.b16 %v192
    %v282 = vunpack.c.h.b16 %v192
    %v283 = vunpack.c.l.b16 %v193
    %v284 = vunpack.c.h.b16 %v193
    %v285 = vunpack.c.l.b16 %v194
    %v286 = vunpack.c.h.b16 %v194
    %v287 = vunpack.c.l.b16 %v195
    %v288 = vunpack.c.h.b16 %v195
    %v289 = vunpack.c.l.b16 %v196
    %v290 = vunpack.c.h.b16 %v196
    %v291 = vunpack.c.l.b16 %v197
    %v292 = vunpack.c.h.b16 %v197
    %v293 = vunpack.c.l.b16 %v198
    %v294 = vunpack.c.h.b16 %v198
    %v295 = vunpack.c.l.b16 %v199
    %v296 = vunpack.c.h.b16 %v199
    %v297 = vunpack.c.l.b16 %v200
    %v298 = vunpack.c.h.b16 %v200
    %v299 = vunpack.c.l.b16 %v201
    %v300 = vunpack.c.h.b16 %v201
    %v301 = vunpack.c.l.b16 %v202
    %v302 = vunpack.c.h.b16 %v202
    %v303 = vunpack.c.l.b16 %v203
    %v304 = vunpack.c.h.b16 %v203
    %v305 = vunpack.c.l.b16 %v204
    %v306 = vunpack.c.h.b16 %v204
    %v307 = vunpack.c.l.b16 %v205
    %v308 = vunpack.c.h.b16 %v205
    %v309 = vunpack.c.l.b16 %v206
    %v310 = vunpack.c.h.b16 %v206
    %v311 = vunpack.c.l.b16 %v207
    %v312 = vunpack.c.h.b16 %v207
    %v313 = vunpack.c.l.b16 %v208
    %v314 = vunpack.c.h.b16 %v208
    %v315 = vunpack.c.l.b16 %v209
    %v316 = vunpack.c.h.b16 %v209
    %v317 = vunpack.c.l.b16 %v210
    %v318 = vunpack.c.h.b16 %v210
    %v319 = vpack.c.b16 %v257, %v255
    %v320 = vpack.c.b16 %v258, %v256
    %v321 = vpack.c.b16 %v261, %v259
    %v322 = vpack.c.b16 %v262, %v260
    %v323 = vpack.c.b16 %v265, %v263
    %v324 = vpack.c.b16 %v266, %v264
    %v325 = vpack.c.b16 %v269, %v267
    %v326 = vpack.c.b16 %v270, %v268
    %v327 = vpack.c.b16 %v273, %v271
    %v328 = vpack.c.b16 %v274, %v272
    %v329 = vpack.c.b16 %v277, %v275
    %v330 = vpack.c.b16 %v278, %v276
    %v331 = vpack.c.b16 %v281, %v279
    %v332 = vpack.c.b16 %v282, %v280
    %v333 = vpack.c.b16 %v285, %v283
    %v334 = vpack.c.b16 %v286, %v284
    %v335 = vpack.c.b16 %v289, %v287
    %v336 = vpack.c.b16 %v290, %v288
    %v337 = vpack.c.b16 %v293, %v291
    %v338 = vpack.c.b16 %v294, %v292
    %v339 = vpack.c.b16 %v297, %v295
    %v340 = vpack.c.b16 %v298, %v296
    %v341 = vpack.c.b16 %v301, %v299
    %v342 = vpack.c.b16 %v302, %v300
    %v343 = vpack.c.b16 %v305, %v303
    %v344 = vpack.c.b16 %v306, %v304
    %v345 = vpack.c.b16 %v309, %v307
    %v346 = vpack.c.b16 %v310, %v308
    %v347 = vpack.c.b16 %v313, %v311
    %v348 = vpack.c.b16 %v314, %v312
    %v349 = vpack.c.b16 %v317, %v315
    %v350 = vpack.c.b16 %v318, %v316
    %383 = vmatprep.subr.bf16.mxu0 %v320
    %384 = vmatpush1.bf16.msra.mxu0 %v319
    %385 = vmatprep.subr.bf16.mxu0 %v322
    %386 = vmatpush1.bf16.msra.mxu0 %v321
    %387 = vmatprep.subr.bf16.mxu0 %v324
    %388 = vmatpush1.bf16.msra.mxu0 %v323
    %389 = vmatprep.subr.bf16.mxu0 %v326
    %390 = vmatpush1.bf16.msra.mxu0 %v325
    %391 = vmatprep.subr.bf16.mxu0 %v328
    %392 = vmatpush1.bf16.msra.mxu0 %v327
    %393 = vmatprep.subr.bf16.mxu0 %v330
    %394 = vmatpush1.bf16.msra.mxu0 %v329
    %395 = vmatprep.subr.bf16.mxu0 %v332
    %396 = vmatpush1.bf16.msra.mxu0 %v331
    %397 = vmatprep.subr.bf16.mxu0 %v334
    %398 = vmatpush1.bf16.msra.mxu0 %v333
    %399 = vmatprep.subr.bf16.mxu0 %v336
    %400 = vmatpush1.bf16.msra.mxu0 %v335
    %401 = vmatprep.subr.bf16.mxu0 %v338
    %402 = vmatpush1.bf16.msra.mxu0 %v337
    %403 = vmatprep.subr.bf16.mxu0 %v340
    %404 = vmatpush1.bf16.msra.mxu0 %v339
    %405 = vmatprep.subr.bf16.mxu0 %v342
    %406 = vmatpush1.bf16.msra.mxu0 %v341
    %407 = vmatprep.subr.bf16.mxu0 %v344
    %408 = vmatpush1.bf16.msra.mxu0 %v343
    %409 = vmatprep.subr.bf16.mxu0 %v346
    %410 = vmatpush1.bf16.msra.mxu0 %v345
    %411 = vmatprep.subr.bf16.mxu0 %v348
    %412 = vmatpush1.bf16.msra.mxu0 %v347
    %413 = vmatprep.subr.bf16.mxu0 %v350
    %414 = vmatpush1.bf16.msra.mxu0 %v349
    %415 = vmatprep.mubr.bf16.mxu0 %v178
    %416 = vmatmul.mubr.bf16.gmra.mrb[0].mxu0 %v177
    %v417 = vpop.f32.mrb[0].mxu0
    %v418 = vadd.f32 %v216, %v417
    %v419 = vpop.f32.mrb[0].mxu0
    %v420 = vadd.f32 %v220, %v419
    %v421 = vpop.f32.mrb[0].mxu0
    %v422 = vpop.f32.mrb[0].mxu0
    %423 = vdwg.mxu0
    %v424 = vmax.f32 %v418, 0.0
    %v425 = vmax.f32 %v420, 0.0
    %v426 = vpack.c.bf16 %v424, %v424
    %v427 = vpack.c.bf16 %v425, %v425
    %v428 = vld [vmem:[#allocation10] sm:$0xf]
    %v429 = vld [vmem:[#allocation10 + $0x4] sm:$0xf]
    %v430 = vld [vmem:[#allocation10 + $0x8] sm:$0xf]
    %v431 = vld [vmem:[#allocation10 + $0xc] sm:$0xf]
    %v432 = vld [vmem:[#allocation10 + $0x10] sm:$0xf]
    %v433 = vld [vmem:[#allocation10 + $0x14] sm:$0xf]
    %v434 = vld [vmem:[#allocation10 + $0x18] sm:$0xf]
    %v435 = vld [vmem:[#allocation10 + $0x1c] sm:$0xf]
    %v436 = vld [vmem:[#allocation10 + $0x20] sm:$0xf]
    %v437 = vld [vmem:[#allocation10 + $0x24] sm:$0xf]
    %v438 = vld [vmem:[#allocation10 + $0x28] sm:$0xf]
    %v439 = vld [vmem:[#allocation10 + $0x2c] sm:$0xf]
    %v440 = vld [vmem:[#allocation10 + $0x30] sm:$0xf]
    %v441 = vld [vmem:[#allocation10 + $0x34] sm:$0xf]
    %v442 = vld [vmem:[#allocation10 + $0x38] sm:$0xf]
    %v443 = vld [vmem:[#allocation10 + $0x3c] sm:$0xf]
    %v444 = vld [vmem:[#allocation10 + $0x40] sm:$0xf]
    %v445 = vld [vmem:[#allocation10 + $0x44] sm:$0xf]
    %v446 = vld [vmem:[#allocation10 + $0x48] sm:$0xf]
    %v447 = vld [vmem:[#allocation10 + $0x4c] sm:$0xf]
    %v448 = vld [vmem:[#allocation10 + $0x50] sm:$0xf]
    %v449 = vld [vmem:[#allocation10 + $0x54] sm:$0xf]
    %v450 = vld [vmem:[#allocation10 + $0x58] sm:$0xf]
    %v451 = vld [vmem:[#allocation10 + $0x5c] sm:$0xf]
    %v452 = vld [vmem:[#allocation10 + $0x60] sm:$0xf]
    %v453 = vld [vmem:[#allocation10 + $0x64] sm:$0xf]
    %v454 = vld [vmem:[#allocation10 + $0x68] sm:$0xf]
    %v455 = vld [vmem:[#allocation10 + $0x6c] sm:$0xf]
    %v456 = vld [vmem:[#allocation10 + $0x70] sm:$0xf]
    %v457 = vld [vmem:[#allocation10 + $0x74] sm:$0xf]
    %v458 = vld [vmem:[#allocation10 + $0x78] sm:$0xf]
    %v459 = vld [vmem:[#allocation10 + $0x7c] sm:$0xf]
    %v460 = vld [vmem:[%s7] sm:$0x1]
    %v462 = vlaneseq
    %v463 = vshrl.u32 %v462, 7
    %v464 = vsub.s32 0, %v463
    %v465 = vrot.slane %v460, %v464
    %v499 = vunpack.c.l.b16 %v428
    %v500 = vunpack.c.l.b16 %v429
    %v501 = vunpack.c.l.b16 %v430
    %v502 = vunpack.c.l.b16 %v431
    %v503 = vunpack.c.l.b16 %v432
    %v504 = vunpack.c.l.b16 %v433
    %v505 = vunpack.c.l.b16 %v434
    %v506 = vunpack.c.l.b16 %v435
    %v507 = vunpack.c.l.b16 %v436
    %v508 = vunpack.c.l.b16 %v437
    %v509 = vunpack.c.l.b16 %v438
    %v510 = vunpack.c.l.b16 %v439
    %v511 = vunpack.c.l.b16 %v440
    %v512 = vunpack.c.l.b16 %v441
    %v513 = vunpack.c.l.b16 %v442
    %v514 = vunpack.c.l.b16 %v443
    %v515 = vunpack.c.l.b16 %v444
    %v516 = vunpack.c.l.b16 %v445
    %v517 = vunpack.c.l.b16 %v446
    %v518 = vunpack.c.l.b16 %v447
    %v519 = vunpack.c.l.b16 %v448
    %v520 = vunpack.c.l.b16 %v449
    %v521 = vunpack.c.l.b16 %v450
    %v522 = vunpack.c.l.b16 %v451
    %v523 = vunpack.c.l.b16 %v452
    %v524 = vunpack.c.l.b16 %v453
    %v525 = vunpack.c.l.b16 %v454
    %v526 = vunpack.c.l.b16 %v455
    %v527 = vunpack.c.l.b16 %v456
    %v528 = vunpack.c.l.b16 %v457
    %v529 = vunpack.c.l.b16 %v458
    %v530 = vunpack.c.l.b16 %v459
    %v531 = vpack.c.b16 %v500, %v499
    %v532 = vpack.c.b16 %v502, %v501
    %v533 = vpack.c.b16 %v504, %v503
    %v534 = vpack.c.b16 %v506, %v505
    %v535 = vpack.c.b16 %v508, %v507
    %v536 = vpack.c.b16 %v510, %v509
    %v537 = vpack.c.b16 %v512, %v511
    %v538 = vpack.c.b16 %v514, %v513
    %v539 = vpack.c.b16 %v516, %v515
    %v540 = vpack.c.b16 %v518, %v517
    %v541 = vpack.c.b16 %v520, %v519
    %v542 = vpack.c.b16 %v522, %v521
    %v543 = vpack.c.b16 %v524, %v523
    %v544 = vpack.c.b16 %v526, %v525
    %v545 = vpack.c.b16 %v528, %v527
    %v546 = vpack.c.b16 %v530, %v529
    %563 = vmatprep.subr.bf16.mxu0 0
    %564 = vmatpush1.bf16.msra.mxu0 %v531
    %565 = vmatprep.subr.bf16.mxu0 0
    %566 = vmatpush1.bf16.msra.mxu0 %v532
    %567 = vmatprep.subr.bf16.mxu0 0
    %568 = vmatpush1.bf16.msra.mxu0 %v533
    %569 = vmatprep.subr.bf16.mxu0 0
    %570 = vmatpush1.bf16.msra.mxu0 %v534
    %571 = vmatprep.subr.bf16.mxu0 0
    %572 = vmatpush1.bf16.msra.mxu0 %v535
    %573 = vmatprep.subr.bf16.mxu0 0
    %574 = vmatpush1.bf16.msra.mxu0 %v536
    %575 = vmatprep.subr.bf16.mxu0 0
    %576 = vmatpush1.bf16.msra.mxu0 %v537
    %577 = vmatprep.subr.bf16.mxu0 0
    %578 = vmatpush1.bf16.msra.mxu0 %v538
    %579 = vmatprep.subr.bf16.mxu0 0
    %580 = vmatpush1.bf16.msra.mxu0 %v539
    %581 = vmatprep.subr.bf16.mxu0 0
    %582 = vmatpush1.bf16.msra.mxu0 %v540
    %583 = vmatprep.subr.bf16.mxu0 0
    %584 = vmatpush1.bf16.msra.mxu0 %v541
    %585 = vmatprep.subr.bf16.mxu0 0
    %586 = vmatpush1.bf16.msra.mxu0 %v542
    %587 = vmatprep.subr.bf16.mxu0 0
    %588 = vmatpush1.bf16.msra.mxu0 %v543
    %589 = vmatprep.subr.bf16.mxu0 0
    %590 = vmatpush1.bf16.msra.mxu0 %v544
    %591 = vmatprep.subr.bf16.mxu0 0
    %592 = vmatpush1.bf16.msra.mxu0 %v545
    %593 = vmatprep.subr.bf16.mxu0 0
    %594 = vmatpush1.bf16.msra.mxu0 %v546
    %595 = vmatprep.mubr.bf16.mxu0 %v427
    %596 = vmatmul.mubr.bf16.gmra.mrb[0].mxu0 %v426
    %v597 = vpop.f32.mrb[0].mxu0
    %v598 = vadd.f32 %v465, %v597
    %v599 = vpop.f32.mrb[0].mxu0
    %v600 = vpop.f32.mrb[0].mxu0
    %v601 = vpop.f32.mrb[0].mxu0
    %602 = vdwg.mxu0
    %v603 = vtanh.pop %v598
    %604 = vst [vmem:[#allocation12] sm:$0xff] %v603
    // Predicated region
    $region46: #{tpu_custom_call.1} parent=1 // pred_check
      _
    $region47: #{tpu_custom_call.1} parent=1 // pred_check_branch
      %606 = sbr.rel (0) target = $region49
    $region48: #{tpu_custom_call.1} parent=1 // pred_region
      %s608 = ssub.s32 128, 128
      %609 = vsyncadd [#allocation6], %s608
      %s611 = sshll.u32 [#allocation12], 4
      %s612 = int_to_ptr.vmem [resolvable:$true] %s611
      %614 = dma.vmem_to_hbm [thread:$0]  %s612, 128, %s8, [#allocation6]
    $region49: #{tpu_custom_call.1} parent=1 // pred_fallthru
      _
    // Predicated region
    $region50: #{tpu_custom_call.1} parent=1 // pred_check
      _
    $region51: #{tpu_custom_call.1} parent=1 // pred_check_branch
      %616 = sbr.rel (0) target = $region53
    $region52: #{tpu_custom_call.1} parent=1 // pred_region
      %617 = dma.done [#allocation6], 128
    $region53: #{tpu_custom_call.1} parent=1 // pred_fallthru
      _
    %618 = vsyncpa [#allocation5], 1
    %619 = vsyncpa [#allocation8], 1
    %620 = vsyncpa [#allocation11], 1
    %621 = vsyncpa [#allocation6], 1

</llo_original>
